<compile_context>
chip_gen: v7x
topology: tpu7x:2x2x1
jax: 0.10.0
libtpu: 0.0.40
codegen_flags: <defaults>
</compile_context>

<pallas_src>
import jax
import jax.numpy as jnp
import numpy as np
from jax.experimental import pallas as pl
from jax.experimental.pallas import tpu as pltpu


def _embed_kernel(p_ref, w_ref, pos_ref, o_ref):
    # p_ref:   (m_blk, K)   patches (possibly bf16)
    # w_ref:   (K, C)       conv weight reshaped (possibly bf16)
    # pos_ref: (m_blk, C)   tile positional embedding + conv bias, f32
    # o_ref:   (m_blk, C)
    y = jnp.dot(p_ref[...], w_ref[...], preferred_element_type=jnp.float32)
    o_ref[...] = (y + pos_ref[...]).astype(o_ref.dtype)


def image_space_embedding(x, conv_w, conv_b, pos_emb, tile_height, tile_width,
                          *, m_block=512, compute_dtype=None):
    """x: (B, C_in, H, W) NCHW. Returns (T, B, C) matching the PyTorch module."""
    B, Cin, H, W = x.shape
    th, tw = tile_height, tile_width
    yt, xt = H // th, W // tw
    T = yt * xt
    C = conv_w.shape[0]
    K = Cin * th * tw
    M = T * B
    out_dtype = x.dtype

    # --- glue: one fused transpose; patches flattened T-major -> (M, K),
    #     patch pixels in (C_in, th, tw) order to match Conv2d weight layout.
    p = x.reshape(B, Cin, yt, th, xt, tw)
    p = p.transpose(2, 4, 0, 1, 3, 5)            # (yt, xt, B, Cin, th, tw)
    p = p.reshape(M, K)                          # row m = t*B + b

    # --- glue: conv weight (C, Cin, th, tw) -> (K, C)
    w = conv_w.reshape(C, K).T

    # --- fold conv bias into the positional slab, pre-broadcast to (M, C) f32
    pos_b = (pos_emb.astype(jnp.float32) + conv_b.astype(jnp.float32)[None, :])
    pos_b = jnp.repeat(pos_b, B, axis=0)         # (M, C), row m -> pos[m // B]

    if compute_dtype is not None:
        p = p.astype(compute_dtype)
        w = w.astype(compute_dtype)

    # --- tiling over M (lane-dense 2-D blocks); pad ragged M.
    m_blk = min(m_block, M)
    if m_blk < M:
        m_blk = max(8, (m_blk // 8) * 8)
    n_blocks = pl.cdiv(M, m_blk)
    M_pad = n_blocks * m_blk
    if M_pad != M:
        p = jnp.pad(p, ((0, M_pad - M), (0, 0)))
        pos_b = jnp.pad(pos_b, ((0, M_pad - M), (0, 0)))

    out = pl.pallas_call(
        _embed_kernel,
        out_shape=jax.ShapeDtypeStruct((M_pad, C), out_dtype),
        grid_spec=pltpu.PrefetchScalarGridSpec(
            num_scalar_prefetch=0,
            grid=(n_blocks,),
            in_specs=[
                pl.BlockSpec((m_blk, K), lambda i: (i, 0)),   # patches
                pl.BlockSpec((K, C), lambda i: (0, 0)),       # weight (resident)
                pl.BlockSpec((m_blk, C), lambda i: (i, 0)),   # pos + bias slab
            ],
            out_specs=pl.BlockSpec((m_blk, C), lambda i: (i, 0)),
        ),
        compiler_params=pltpu.CompilerParams(
            dimension_semantics=("parallel",)),
    )(p, w, pos_b)

    out = out[:M].reshape(T, B, C)               # T-major flatten -> free reshape
    return out


def reference(x, conv_w, conv_b, pos_emb, th, tw):
    """Plain-JAX reference of the PyTorch forward (for verification)."""
    B, Cin, H, W = x.shape
    yt, xt = H // th, W // tw
    T = yt * xt
    C = conv_w.shape[0]
    p = x.reshape(B, Cin, yt, th, xt, tw).transpose(0, 2, 4, 1, 3, 5)
    p = p.reshape(B, T, Cin * th * tw)
    y = jnp.einsum("btk,ck->btc", p, conv_w.reshape(C, -1)) + conv_b
    y = y.transpose(1, 0, 2)                     # (T, B, C)
    return y + pos_emb[:, None, :]


if __name__ == "__main__":
    # Shapes consistent with the module:
    #   observation_space: channels=4, height=width=16; tile 4x4; channels(out)=32
    B, Cin, H, W = 2, 4, 16, 16
    th, tw = 4, 4
    C = 32
    T = (H // th) * (W // tw)                    # 16 tiles
    K = Cin * th * tw                            # 64

    key = jax.random.PRNGKey(0)
    kx, kw, kb, kp = jax.random.split(key, 4)
    x = jax.random.normal(kx, (B, Cin, H, W), dtype=jnp.float32)
    conv_w = jax.random.normal(kw, (C, Cin, th, tw), dtype=jnp.float32) * 0.05
    conv_b = jax.random.normal(kb, (C,), dtype=jnp.float32) * 0.05
    pos_emb = jax.random.normal(kp, (T, C), dtype=jnp.float32) * 0.02

    ref = reference(x, conv_w, conv_b, pos_emb, th, tw)

    # f32 path (exact vs reference)
    out = image_space_embedding(x, conv_w, conv_b, pos_emb, th, tw)
    out = jax.block_until_ready(out)
    assert out.shape == (T, B, C), out.shape
    np.testing.assert_allclose(np.asarray(out), np.asarray(ref),
                               rtol=1e-5, atol=1e-5)

    # bf16 operand path (v6e/v7x DMA saving); f32 accumulation, loose tolerance
    out_bf = image_space_embedding(x, conv_w, conv_b, pos_emb, th, tw,
                                   compute_dtype=jnp.bfloat16)
    out_bf = jax.block_until_ready(out_bf)
    np.testing.assert_allclose(np.asarray(out_bf), np.asarray(ref),
                               rtol=5e-2, atol=5e-2)

    print("KERNEL_OK")
</pallas_src>

<mosaic_0001>
module attributes {stable_mosaic.version = 11 : i64} {
  func.func @_embed_kernel(%arg0: i32, %arg1: memref<32x64xf32, #tpu.memory_space<vmem>>, %arg2: memref<64x32xf32, #tpu.memory_space<vmem>>, %arg3: memref<32x32xf32, #tpu.memory_space<vmem>>, %arg4: memref<32x32xf32, #tpu.memory_space<vmem>>) attributes {dimension_semantics = [#tpu.dimension_semantics<parallel>], iteration_bounds = array<i64: 1>, scalar_prefetch = 0 : i64, scratch_operands = 0 : i64, tpu.core_type = #tpu.core_type<tc>, window_params = [{transform_indices = @transform_0, window_bounds = array<i64: 32, 64>}, {pipeline_mode = #tpu.pipeline_mode<synchronous>, transform_indices = @transform_1, window_bounds = array<i64: 64, 32>}, {transform_indices = @transform_2, window_bounds = array<i64: 32, 32>}, {transform_indices = @transform_3, window_bounds = array<i64: 32, 32>}]} {
    %c0 = arith.constant 0 : index
    %c0_0 = arith.constant 0 : index
    %0 = vector.load %arg1[%c0, %c0_0] : memref<32x64xf32, #tpu.memory_space<vmem>>, vector<32x64xf32>
    %c0_1 = arith.constant 0 : index
    %c0_2 = arith.constant 0 : index
    %1 = vector.load %arg2[%c0_1, %c0_2] : memref<64x32xf32, #tpu.memory_space<vmem>>, vector<64x32xf32>
    %cst = arith.constant dense<0.000000e+00> : vector<32x32xf32>
    %2 = tpu.matmul %0, %1, %cst {dimension_numbers = #tpu.dot_dimension_numbers<[1], [0], [0], [1], [0, 0, 1, 1], [], []>} : vector<32x64xf32>, vector<64x32xf32>, vector<32x32xf32> -> vector<32x32xf32>
    %c0_3 = arith.constant 0 : index
    %c0_4 = arith.constant 0 : index
    %3 = vector.load %arg3[%c0_3, %c0_4] : memref<32x32xf32, #tpu.memory_space<vmem>>, vector<32x32xf32>
    %4 = arith.addf %2, %3 : vector<32x32xf32>
    %c0_5 = arith.constant 0 : index
    %c0_6 = arith.constant 0 : index
    %5 = vector.load %arg4[%c0_5, %c0_6] : memref<32x32xf32, #tpu.memory_space<vmem>>, vector<32x32xf32>
    tpu.vector_store %arg4[%c0_5, %c0_6], %4 {strides = array<i32>} : memref<32x32xf32, #tpu.memory_space<vmem>>, vector<32x32xf32>,
    return
  }
  func.func @transform_0(%arg0: i32) -> (i32, i32) {
    %c0_i32 = arith.constant 0 : i32
    %c0_i32_0 = arith.constant 0 : i32
    return %arg0, %c0_i32 : i32, i32
  }
  func.func @transform_1(%arg0: i32) -> (i32, i32) {
    %c0_i32 = arith.constant 0 : i32
    %c0_i32_0 = arith.constant 0 : i32
    %c0_i32_1 = arith.constant 0 : i32
    return %c0_i32, %c0_i32_0 : i32, i32
  }
  func.func @transform_2(%arg0: i32) -> (i32, i32) {
    %c0_i32 = arith.constant 0 : i32
    %c0_i32_0 = arith.constant 0 : i32
    return %arg0, %c0_i32 : i32, i32
  }
  func.func @transform_3(%arg0: i32) -> (i32, i32) {
    %c0_i32 = arith.constant 0 : i32
    %c0_i32_0 = arith.constant 0 : i32
    return %arg0, %c0_i32 : i32, i32
  }
}

</mosaic_0001>

<llo_original>
// kernel: tpu_custom_call.1
$region0: #{tpu_custom_call.1}
  #allocation0 [shape = 'u32[]', space=smem, size = 0x4, offset = 0x4, fixed_abs, tag = 'smem constant byte address 0x4 - core index']
  #allocation1 [shape = 'u32[144,128]{1,0:T(1,128)}', space=vmem, size = 0x12000, scoped, tag = 'internal scratch']
  %s0 = inlined_call_operand.vmem [shape: f32[32,64], index: 0, kind: input, shape index: {}]
  %s1 = inlined_call_operand.vmem [shape: f32[64,32], index: 1, kind: input, shape index: {}]
  %s2 = inlined_call_operand.vmem [shape: f32[32,32], index: 2, kind: input, shape index: {}]
  %s3 = inlined_call_operand.hbm [shape: f32[32,32], index: 3, kind: output, shape index: {}]
  %s4 = sld [smem:[#allocation0]]
  $region22: #{tpu_custom_call.1} parent=0
    _
  %s6 = ssub.s32 1, %s4
  %s7 = scalar_select 0, %s6, %s4
  $region1: #{tpu_custom_call.1} parent=0
    #allocation2 [shape = 'u8[16384]{0}', space=vmem, size = 0x4000, scoped, tag = 'output window, operand 0, single buffered']
    #allocation3 [shape = 's32[1]{0}', space=sflag, size = 0x4, scoped, tag = 'scoped memory for tpu_custom_call.1']
    %8 = vsyncpa [#allocation3], 0
    // Predicated region
    $region2: #{tpu_custom_call.1} parent=1 // pred_check
      _
    $region3: #{tpu_custom_call.1} parent=1 // pred_check_branch
      %10 = sbr.rel (0) target = $region5
    $region4: #{tpu_custom_call.1} parent=1 // pred_region
      _
    $region5: #{tpu_custom_call.1} parent=1 // pred_fallthru
      _
    // Predicated region
    $region6: #{tpu_custom_call.1} parent=1 // pred_check
      _
    $region7: #{tpu_custom_call.1} parent=1 // pred_check_branch
      %12 = sbr.rel (0) target = $region9
    $region8: #{tpu_custom_call.1} parent=1 // pred_region
      _
    $region9: #{tpu_custom_call.1} parent=1 // pred_fallthru
      _
    // Predicated region
    $region10: #{tpu_custom_call.1} parent=1 // pred_check
      _
    $region11: #{tpu_custom_call.1} parent=1 // pred_check_branch
      %14 = sbr.rel (0) target = $region13
    $region12: #{tpu_custom_call.1} parent=1 // pred_region
      _
    $region13: #{tpu_custom_call.1} parent=1 // pred_fallthru
      _
    %v15 = vld [vmem:[%s0] sm:$0xff]
    %v16 = vld [vmem:[%s0 + $0x8] sm:$0xff]
    %v17 = vld [vmem:[%s0 + $0x10] sm:$0xff]
    %v18 = vld [vmem:[%s0 + $0x18] sm:$0xff]
    %v19 = vld [vmem:[%s1] sm:$0xff]
    %v20 = vld [vmem:[%s1 + $0x8] sm:$0xff]
    %v21 = vld [vmem:[%s1 + $0x10] sm:$0xff]
    %v22 = vld [vmem:[%s1 + $0x18] sm:$0xff]
    %v23 = vld [vmem:[%s1 + $0x20] sm:$0xff]
    %v24 = vld [vmem:[%s1 + $0x28] sm:$0xff]
    %v25 = vld [vmem:[%s1 + $0x30] sm:$0xff]
    %v26 = vld [vmem:[%s1 + $0x38] sm:$0xff]
    %v27 = vld [vmem:[%s2] sm:$0xff]
    %v28 = vld [vmem:[%s2 + $0x8] sm:$0xff]
    %v29 = vld [vmem:[%s2 + $0x10] sm:$0xff]
    %v30 = vld [vmem:[%s2 + $0x18] sm:$0xff]
    %vm31 = vcmask 523264
    %v33 = vsel %vm31, %v15, 0
    %v36 = vsel %vm31, %v16, 0
    %v39 = vsel %vm31, %v17, 0
    %v42 = vsel %vm31, %v18, 0
    %44 = vmatprep.subr.mxu0 0.0
    %45 = vmatpush1.msra.mxu0 %v19
    %46 = vmatprep.subr.mxu0 0.0
    %47 = vmatpush1.msra.mxu0 %v20
    %48 = vmatprep.subr.mxu0 0.0
    %49 = vmatpush1.msra.mxu0 %v21
    %50 = vmatprep.subr.mxu0 0.0
    %51 = vmatpush1.msra.mxu0 %v22
    %52 = vmatprep.subr.mxu0 0.0
    %53 = vmatpush1.msra.mxu0 %v23
    %54 = vmatprep.subr.mxu0 0.0
    %55 = vmatpush1.msra.mxu0 %v24
    %56 = vmatprep.subr.mxu0 0.0
    %57 = vmatpush1.msra.mxu0 %v25
    %58 = vmatprep.subr.mxu0 0.0
    %59 = vmatpush1.msra.mxu0 %v26
    %60 = vmatprep.subr.mxu0 0.0
    %61 = vmatpush1.msra.mxu0 0.0
    %62 = vmatprep.subr.mxu0 0.0
    %63 = vmatpush1.msra.mxu0 0.0
    %64 = vmatprep.subr.mxu0 0.0
    %65 = vmatpush1.msra.mxu0 0.0
    %66 = vmatprep.subr.mxu0 0.0
    %67 = vmatpush1.msra.mxu0 0.0
    %68 = vmatprep.subr.mxu0 0.0
    %69 = vmatpush1.msra.mxu0 0.0
    %70 = vmatprep.subr.mxu0 0.0
    %71 = vmatpush1.msra.mxu0 0.0
    %72 = vmatprep.subr.mxu0 0.0
    %73 = vmatpush1.msra.mxu0 0.0
    %74 = vmatprep.subr.mxu0 0.0
    %75 = vmatpush1.msra.mxu0 0.0
    %76 = vmatprep.subr.mxu0 0.0
    %77 = vmatpush1.msra.mxu0 0.0
    %78 = vmatprep.subr.mxu0 0.0
    %79 = vmatpush1.msra.mxu0 0.0
    %80 = vmatprep.subr.mxu0 0.0
    %81 = vmatpush1.msra.mxu0 0.0
    %82 = vmatprep.subr.mxu0 0.0
    %83 = vmatpush1.msra.mxu0 0.0
    %84 = vmatprep.subr.mxu0 0.0
    %85 = vmatpush1.msra.mxu0 0.0
    %86 = vmatprep.subr.mxu0 0.0
    %87 = vmatpush1.msra.mxu0 0.0
    %88 = vmatprep.subr.mxu0 0.0
    %89 = vmatpush1.msra.mxu0 0.0
    %90 = vmatprep.subr.mxu0 0.0
    %91 = vmatpush1.msra.mxu0 0.0
    %92 = vmatprep.subr.mxu0 0.0
    %93 = vmatpush1.msra.mxu0 0.0
    %94 = vmatprep.subr.mxu0 0.0
    %95 = vmatpush1.msra.mxu0 0.0
    %96 = vmatprep.subr.mxu0 0.0
    %97 = vmatpush1.msra.mxu0 0.0
    %98 = vmatprep.subr.mxu0 0.0
    %99 = vmatpush1.msra.mxu0 0.0
    %100 = vmatprep.subr.mxu0 0.0
    %101 = vmatpush1.msra.mxu0 0.0
    %102 = vmatprep.subr.mxu0 0.0
    %103 = vmatpush1.msra.mxu0 0.0
    %104 = vmatprep.subr.mxu0 0.0
    %105 = vmatpush1.msra.mxu0 0.0
    %106 = vmatprep.subr.mxu0 0.0
    %107 = vmatpush1.msra.mxu0 0.0
    %108 = vmatprep.mubr.f32.mxu0 0.0
    %109 = vmatmul.mubr.f32.gmra.mrb[0].mxu0 %v33
    %v110 = vpop.f32.mrb[0].mxu0
    %v111 = vadd.f32 %v27, %v110
    %v112 = vpop.f32.mrb[0].mxu0
    %113 = vmatprep.mubr.f32.mxu0 0.0
    %114 = vmatmul.mubr.f32.gmra.mrb[0].mxu0 %v36
    %v115 = vpop.f32.mrb[0].mxu0
    %v116 = vadd.f32 %v28, %v115
    %v117 = vpop.f32.mrb[0].mxu0
    %118 = vmatprep.mubr.f32.mxu0 0.0
    %119 = vmatmul.mubr.f32.gmra.mrb[0].mxu0 %v39
    %v120 = vpop.f32.mrb[0].mxu0
    %v121 = vadd.f32 %v29, %v120
    %v122 = vpop.f32.mrb[0].mxu0
    %123 = vmatprep.mubr.f32.mxu0 0.0
    %124 = vmatmul.mubr.f32.gmra.mrb[0].mxu0 %v42
    %v125 = vpop.f32.mrb[0].mxu0
    %v126 = vadd.f32 %v30, %v125
    %v127 = vpop.f32.mrb[0].mxu0
    %128 = vdwg.mxu0
    %vm129 = vcmask 261120
    %130 = vst.msk [vmem:[#allocation2] sm:$0xff] %vm129, %v111
    %131 = vst.msk [vmem:[#allocation2 + $0x8] sm:$0xff] %vm129, %v116
    %132 = vst.msk [vmem:[#allocation2 + $0x10] sm:$0xff] %vm129, %v121
    %133 = vst.msk [vmem:[#allocation2 + $0x18] sm:$0xff] %vm129, %v126
    // Predicated region
    $region14: #{tpu_custom_call.1} parent=1 // pred_check
      _
    $region15: #{tpu_custom_call.1} parent=1 // pred_check_branch
      %135 = sbr.rel (0) target = $region17
    $region16: #{tpu_custom_call.1} parent=1 // pred_region
      %s137 = ssub.s32 512, 512
      %138 = vsyncadd [#allocation3], %s137
      %s139 = sshll.u32 [#allocation2], 4
      %s140 = int_to_ptr.vmem [resolvable:$true] %s139
      %145 = dma.vmem_to_hbm [thread:$0]  %s140, 512, %s3, [#allocation3], 128, 128, 8
    $region17: #{tpu_custom_call.1} parent=1 // pred_fallthru
      _
    // Predicated region
    $region18: #{tpu_custom_call.1} parent=1 // pred_check
      _
    $region19: #{tpu_custom_call.1} parent=1 // pred_check_branch
      %147 = sbr.rel (0) target = $region21
    $region20: #{tpu_custom_call.1} parent=1 // pred_region
      %148 = dma.done [#allocation3], 512
    $region21: #{tpu_custom_call.1} parent=1 // pred_fallthru
      _
    %149 = vsyncpa [#allocation3], 1

</llo_original>
